<compile_context>
chip_gen: v6e
topology: v6e:2x2x1
jax: 0.10.0
libtpu: 0.0.40
codegen_flags: <defaults>
</compile_context>

<pallas_src>
import functools

import jax
import jax.numpy as jnp
from jax import lax
from jax.experimental import pallas as pl
from jax.experimental.pallas import tpu as pltpu


# ----------------------------- stage 1: node projection -----------------------------

def gat_project_kernel(h_ref, wfc_ref, a_dst_ref, a_src_ref,
                       z_ref, s_dst_ref, s_src_ref):
    # z = h @ W_fc^T  (W_fc pre-transposed in the wrapper); f32 accumulation on MXU.
    z = jnp.dot(h_ref[...], wfc_ref[...], preferred_element_type=jnp.float32)
    z_ref[...] = z.astype(z_ref.dtype)          # bf16 copy for the stage-2 PV matmul
    # Per-node halves of the attention logit, computed once so the O(N^2) hot loop
    # never redoes the projection.  Both are emitted as (tile, 1) columns; the wrapper
    # reshapes s_src into a (1, N) row (tiny XLA op, keeps the kernel matmuls trivial).
    s_dst_ref[...] = jnp.dot(z, a_dst_ref[...], preferred_element_type=jnp.float32)
    s_src_ref[...] = jnp.dot(z, a_src_ref[...], preferred_element_type=jnp.float32)


# ----------------- stage 2: edge attention + online-softmax aggregation -------------

def gat_attn_kernel(s_dst_ref, s_src_ref, z_ref, sw_ref, out_ref,
                    m_sc, l_sc, acc_sc, *, tile_src):
    j = pl.program_id(1)

    @pl.when(j == 0)
    def _():
        m_sc[...] = jnp.full_like(m_sc, -jnp.inf)
        l_sc[...] = jnp.zeros_like(l_sc)
        acc_sc[...] = jnp.zeros_like(acc_sc)

    # Pre-contracted edge logits: single bf16 tile, cast once to f32. All elementwise
    # math stays f32 (v5e has no bf16 VALU).
    logits = s_dst_ref[...] + s_src_ref[...] + sw_ref[...].astype(jnp.float32)
    # leaky_relu (torch F.leaky_relu default slope 0.01): maximum = 2 VPU ops/elem.
    e_att = jnp.maximum(logits, 0.01 * logits)

    # ---- online softmax over the src (incoming-edge) axis ----
    m_prev = m_sc[...]
    m_new = jnp.maximum(m_prev, jnp.max(e_att, axis=-1, keepdims=True))
    rescale = jnp.exp(m_prev - m_new)
    p = jnp.exp(e_att - m_new)
    l_sc[...] = rescale * l_sc[...] + jnp.sum(p, axis=-1, keepdims=True)

    # z is fully resident in VMEM (constant index_map); slice the current src tile.
    src0 = pl.multiple_of(j * tile_src, tile_src)
    z_blk = z_ref[pl.ds(src0, tile_src), :]                      # (tile_src, Dout) bf16
    # bf16 x bf16 -> f32 PV matmul: full MXU rate, half the operand bytes.
    acc_sc[...] = rescale * acc_sc[...] + jnp.dot(
        p.astype(jnp.bfloat16), z_blk, preferred_element_type=jnp.float32)
    m_sc[...] = m_new

    @pl.when(j == pl.num_programs(1) - 1)
    def _():
        # Deferred normalization: approx reciprocal goes to the EUP slot (free vs a
        # divide) + one (td, out_dim) multiply instead of an (N, N) elementwise divide.
        out_ref[...] = (acc_sc[...] * pl.reciprocal(l_sc[...], approx=True)
                        ).astype(out_ref.dtype)
        # TODO(synk): for multi-head GAT, stack heads on the feature axis so this
        # output block is >=128 lanes wide (lane-dense unmasked stores); single-head
        # out_dim=32 stores are masked but only happen once per dst tile.


# ------------------------------------ wrapper ----------------------------------------

def _round_up(n, m):
    return ((n + m - 1) // m) * m


def _pick_tile(n, candidates, min_blocks=1):
    # Prefer a tile that gives >= min_blocks grid blocks (megacore on v7x needs >=2
    # blocks on the "parallel" dst axis), otherwise the largest divisor candidate.
    for t in candidates:
        if n % t == 0 and n // t >= min_blocks:
            return t
    for t in candidates:
        if n % t == 0:
            return t
    return n


def gat_layer(h, w_edge, wfc, w_attn, *, tile_dst=None, tile_src=None):
    """Forward pass of GATLayer on a dense fully-connected graph.

    h      : (N, in_dim) f32
    w_edge : (N, N, edge_dim) f32, layout [dst, src, :]
    wfc    : (out_dim, in_dim) f32          -- nn.Linear(in_dim, out_dim, bias=False).weight
    w_attn : (1, 2*out_dim + edge_dim) f32  -- nn.Linear(2*out_dim+edge_dim, 1, bias=False).weight
    """
    N, in_dim = h.shape
    out_dim = wfc.shape[0]
    edge_dim = w_edge.shape[-1]
    assert w_edge.shape[:2] == (N, N)
    assert w_attn.shape == (1, 2 * out_dim + edge_dim)

    # ---- parameter prep (O(params), cheap) ----
    h = h.astype(jnp.float32)
    wfc_t = wfc.T.astype(jnp.float32)                 # (in_dim, out_dim)
    a_src_col = w_attn[:, :out_dim].T                 # (out_dim, 1)  weights on z_src
    a_dst_col = w_attn[:, out_dim:2 * out_dim].T      # (out_dim, 1)  weights on z_dst
    a_w = w_attn[0, 2 * out_dim:]                     # (edge_dim,)   weights on edge feat

    # ---- pre-contract the edge features against a_w OUTSIDE the hot loop ----
    # Contract in f32, then cast: the only O(N^2) HBM operand of the hot loop becomes
    # a single bf16 (N, N) array (edge_dim x fewer bytes, no per-plane VALU reduction).
    s_w = jnp.einsum('dse,e->ds', w_edge, a_w).astype(jnp.bfloat16)

    # ---- pad N to a lane multiple; pick tiles ----
    N_pad = _round_up(N, 128)
    pad = N_pad - N
    if tile_dst is None:
        tile_dst = _pick_tile(N_pad, (512, 256, 128), min_blocks=2)
    if tile_src is None:
        tile_src = _pick_tile(N_pad, (1024, 512, 256, 128))
    assert N_pad % tile_dst == 0 and N_pad % tile_src == 0

    h_p = jnp.pad(h, ((0, pad), (0, 0))) if pad else h
    s_w_p = jnp.pad(s_w, ((0, pad), (0, pad))) if pad else s_w

    # ---- stage 1: projection + per-node attention halves ----
    z_bf16, s_dst, s_src_col = pl.pallas_call(
        gat_project_kernel,
        out_shape=(
            jax.ShapeDtypeStruct((N_pad, out_dim), jnp.bfloat16),
            jax.ShapeDtypeStruct((N_pad, 1), jnp.float32),
            jax.ShapeDtypeStruct((N_pad, 1), jnp.float32),
        ),
        grid_spec=pltpu.PrefetchScalarGridSpec(
            num_scalar_prefetch=0,
            grid=(N_pad // tile_dst,),
            in_specs=[
                pl.BlockSpec((tile_dst, in_dim), lambda i: (i, 0)),
                pl.BlockSpec((in_dim, out_dim), lambda i: (0, 0)),
                pl.BlockSpec((out_dim, 1), lambda i: (0, 0)),
                pl.BlockSpec((out_dim, 1), lambda i: (0, 0)),
            ],
            out_specs=[
                pl.BlockSpec((tile_dst, out_dim), lambda i: (i, 0)),
                pl.BlockSpec((tile_dst, 1), lambda i: (i, 0)),
                pl.BlockSpec((tile_dst, 1), lambda i: (i, 0)),
            ],
        ),
        compiler_params=pltpu.CompilerParams(dimension_semantics=("parallel",)),
    )(h_p, wfc_t, a_dst_col, a_src_col)

    # s_src as a (1, N_pad) row; padded src columns get an effectively -inf logit so
    # they carry zero softmax weight.
    s_src = jnp.reshape(s_src_col, (1, N_pad))
    if pad:
        col = lax.broadcasted_iota(jnp.int32, (1, N_pad), 1)
        s_src = jnp.where(col < N, s_src, jnp.float32(-1e30))

    # ---- stage 2: tiled edge attention + online-softmax aggregation ----
    grid = (N_pad // tile_dst, N_pad // tile_src)
    sw_tile_bytes = tile_dst * tile_src * 2            # bf16, dominant HBM stream

    # Generation-aware VMEM cap (v7x has 64 MiB/TC vs 128 MiB on v5e/v6e).
    try:
        hw_vmem = pltpu.get_tpu_info().vmem_capacity_bytes
    except Exception:
        hw_vmem = 64 * 2**20                           # conservative (v7x per-TC)
    vmem_cap = max(32 * 2**20, min(hw_vmem - 16 * 2**20, 100 * 2**20))
    vmem_needed = (8 * sw_tile_bytes                   # s_w double-buffer + temps
                   + 2 * N_pad * out_dim * 2           # resident z (bf16)
                   + 8 * tile_dst * (out_dim + 4) * 4)  # scratch / out / s_dst / s_src
    vmem_limit = int(min(vmem_cap, max(32 * 2**20, vmem_needed)))

    out_pad = pl.pallas_call(
        functools.partial(gat_attn_kernel, tile_src=tile_src),
        out_shape=jax.ShapeDtypeStruct((N_pad, out_dim), jnp.float32),
        grid_spec=pltpu.PrefetchScalarGridSpec(
            num_scalar_prefetch=0,
            grid=grid,
            in_specs=[
                pl.BlockSpec((tile_dst, 1), lambda i, j: (i, 0)),      # s_dst column
                pl.BlockSpec((1, tile_src), lambda i, j: (0, j)),      # s_src row tile
                pl.BlockSpec((N_pad, out_dim), lambda i, j: (0, 0)),   # z resident (bf16)
                # Dominant HBM stream; auto double-buffered by BlockSpec.  Bump to
                # pipeline_mode=pl.Buffered(3) only if a profile shows exposed DMA.
                pl.BlockSpec((tile_dst, tile_src), lambda i, j: (i, j)),  # s_w (bf16)
            ],
            out_specs=pl.BlockSpec((tile_dst, out_dim), lambda i, j: (i, 0)),
            scratch_shapes=[
                pltpu.VMEM((tile_dst, 1), jnp.float32),        # running max m
                pltpu.VMEM((tile_dst, 1), jnp.float32),        # running sum l
                pltpu.VMEM((tile_dst, out_dim), jnp.float32),  # output accumulator
            ],
        ),
        compiler_params=pltpu.CompilerParams(
            dimension_semantics=("parallel", "arbitrary"),
            vmem_limit_bytes=vmem_limit,
        ),
    )(s_dst, s_src, z_bf16, s_w_p)

    return out_pad[:N] if pad else out_pad


# ---------------------------------- reference -----------------------------------------

def gat_reference(h, w_edge, wfc, w_attn, s_w=None):
    """Pure-JAX reference mirroring the PyTorch/DGL semantics on the dense graph.

    Optionally takes a precomputed/quantized s_w = einsum('dse,e->ds', w_edge, a_w)
    so the kernel's bf16 edge-logit stream can be checked at its exact rounding point.
    """
    out_dim = wfc.shape[0]
    z = h @ wfc.T                                                # (N, Dout)
    a_src = w_attn[0, :out_dim]
    a_dst = w_attn[0, out_dim:2 * out_dim]
    a_w = w_attn[0, 2 * out_dim:]
    if s_w is None:
        s_w = jnp.einsum('dse,e->ds', w_edge, a_w)               # (N, N)
    logits = (z @ a_dst)[:, None] + (z @ a_src)[None, :] + s_w   # (N_dst, N_src)
    e = jnp.where(logits > 0, logits, 0.01 * logits)             # F.leaky_relu (slope .01)
    alpha = jax.nn.softmax(e, axis=1)                            # over incoming edges
    return alpha @ z                                             # (N, Dout)


if __name__ == "__main__":
    in_dim, out_dim, edge_dim = 16, 32, 8

    key = jax.random.PRNGKey(0)
    _, _, k3, k4 = jax.random.split(key, 4)

    # deterministic parameter init (shapes as in nn.Linear: (out, in), no bias)
    wfc = jax.random.normal(k3, (out_dim, in_dim), jnp.float32) * (1.0 / jnp.sqrt(in_dim))
    w_attn = jax.random.normal(k4, (1, 2 * out_dim + edge_dim), jnp.float32) * 0.1

    def run_and_check(N, **tile_kwargs):
        kh, kw = jax.random.split(jax.random.fold_in(key, N))
        h = jax.random.normal(kh, (N, in_dim), jnp.float32)
        w_edge = jax.random.normal(kw, (N, N, edge_dim), jnp.float32)

        out = jax.block_until_ready(gat_layer(h, w_edge, wfc, w_attn, **tile_kwargs))
        assert out.shape == (N, out_dim)

        # primary check: reference with s_w contracted in f32 then quantized exactly
        # like the kernel's bf16 hot stream
        a_w = w_attn[0, 2 * out_dim:]
        s_w_q = jnp.einsum('dse,e->ds', w_edge, a_w).astype(jnp.bfloat16).astype(jnp.float32)
        ref_q = gat_reference(h, w_edge, wfc, w_attn, s_w=s_w_q)
        assert jnp.allclose(out, ref_q, atol=1e-2, rtol=1e-2), \
            f"mismatch vs quantized-s_w reference (N={N})"

        # sanity check vs the exact f32 PyTorch-equivalent reference
        ref = gat_reference(h, w_edge, wfc, w_attn)
        assert jnp.allclose(out, ref, atol=2e-2, rtol=2e-2), \
            f"mismatch vs f32 reference (N={N})"

    # 128x128 tiles -> 2x2 grid: exercises the multi-step online-softmax accumulation.
    run_and_check(256, tile_dst=128, tile_src=128)
    # Non-multiple N: exercises the padding + masked-src-column path with default tiles.
    run_and_check(200)

    print("KERNEL_OK")
</pallas_src>

<mosaic_0001>
module attributes {stable_mosaic.version = 11 : i64} {
  func.func @gat_project_kernel(%arg0: i32, %arg1: memref<128x16xf32, #tpu.memory_space<vmem>>, %arg2: memref<16x32xf32, #tpu.memory_space<vmem>>, %arg3: memref<32x1xf32, #tpu.memory_space<vmem>>, %arg4: memref<32x1xf32, #tpu.memory_space<vmem>>, %arg5: memref<128x32xbf16, #tpu.memory_space<vmem>>, %arg6: memref<128x1xf32, #tpu.memory_space<vmem>>, %arg7: memref<128x1xf32, #tpu.memory_space<vmem>>) attributes {dimension_semantics = [#tpu.dimension_semantics<parallel>], iteration_bounds = array<i64: 2>, scalar_prefetch = 0 : i64, scratch_operands = 0 : i64, tpu.core_type = #tpu.core_type<tc>, window_params = [{transform_indices = @transform_0, window_bounds = array<i64: 128, 16>}, {pipeline_mode = #tpu.pipeline_mode<synchronous>, transform_indices = @transform_1, window_bounds = array<i64: 16, 32>}, {pipeline_mode = #tpu.pipeline_mode<synchronous>, transform_indices = @transform_2, window_bounds = array<i64: 32, 1>}, {pipeline_mode = #tpu.pipeline_mode<synchronous>, transform_indices = @transform_3, window_bounds = array<i64: 32, 1>}, {transform_indices = @transform_4, window_bounds = array<i64: 128, 32>}, {transform_indices = @transform_5, window_bounds = array<i64: 128, 1>}, {transform_indices = @transform_6, window_bounds = array<i64: 128, 1>}]} {
    %c0 = arith.constant 0 : index
    %c0_0 = arith.constant 0 : index
    %0 = vector.load %arg1[%c0, %c0_0] : memref<128x16xf32, #tpu.memory_space<vmem>>, vector<128x16xf32>
    %c0_1 = arith.constant 0 : index
    %c0_2 = arith.constant 0 : index
    %1 = vector.load %arg2[%c0_1, %c0_2] : memref<16x32xf32, #tpu.memory_space<vmem>>, vector<16x32xf32>
    %cst = arith.constant dense<0.000000e+00> : vector<128x32xf32>
    %2 = tpu.matmul %0, %1, %cst {dimension_numbers = #tpu.dot_dimension_numbers<[1], [0], [0], [1], [0, 0, 1, 1], [], []>} : vector<128x16xf32>, vector<16x32xf32>, vector<128x32xf32> -> vector<128x32xf32>
    %3 = arith.truncf %2 : vector<128x32xf32> to vector<128x32xbf16>
    %c0_3 = arith.constant 0 : index
    %c0_4 = arith.constant 0 : index
    %4 = vector.load %arg5[%c0_3, %c0_4] : memref<128x32xbf16, #tpu.memory_space<vmem>>, vector<128x32xbf16>
    tpu.vector_store %arg5[%c0_3, %c0_4], %3 {strides = array<i32>} : memref<128x32xbf16, #tpu.memory_space<vmem>>, vector<128x32xbf16>,
    %c0_5 = arith.constant 0 : index
    %c0_6 = arith.constant 0 : index
    %5 = vector.load %arg3[%c0_5, %c0_6] : memref<32x1xf32, #tpu.memory_space<vmem>>, vector<32x1xf32>
    %cst_7 = arith.constant dense<0.000000e+00> : vector<128x1xf32>
    %6 = tpu.matmul %2, %5, %cst_7 {dimension_numbers = #tpu.dot_dimension_numbers<[1], [0], [0], [1], [0, 0, 1, 1], [], []>} : vector<128x32xf32>, vector<32x1xf32>, vector<128x1xf32> -> vector<128x1xf32>
    %c0_8 = arith.constant 0 : index
    %c0_9 = arith.constant 0 : index
    %7 = vector.load %arg6[%c0_8, %c0_9] : memref<128x1xf32, #tpu.memory_space<vmem>>, vector<128x1xf32>
    tpu.vector_store %arg6[%c0_8, %c0_9], %6 {strides = array<i32>} : memref<128x1xf32, #tpu.memory_space<vmem>>, vector<128x1xf32>,
    %c0_10 = arith.constant 0 : index
    %c0_11 = arith.constant 0 : index
    %8 = vector.load %arg4[%c0_10, %c0_11] : memref<32x1xf32, #tpu.memory_space<vmem>>, vector<32x1xf32>
    %cst_12 = arith.constant dense<0.000000e+00> : vector<128x1xf32>
    %9 = tpu.matmul %2, %8, %cst_12 {dimension_numbers = #tpu.dot_dimension_numbers<[1], [0], [0], [1], [0, 0, 1, 1], [], []>} : vector<128x32xf32>, vector<32x1xf32>, vector<128x1xf32> -> vector<128x1xf32>
    %c0_13 = arith.constant 0 : index
    %c0_14 = arith.constant 0 : index
    %10 = vector.load %arg7[%c0_13, %c0_14] : memref<128x1xf32, #tpu.memory_space<vmem>>, vector<128x1xf32>
    tpu.vector_store %arg7[%c0_13, %c0_14], %9 {strides = array<i32>} : memref<128x1xf32, #tpu.memory_space<vmem>>, vector<128x1xf32>,
    return
  }
  func.func @transform_0(%arg0: i32) -> (i32, i32) {
    %c0_i32 = arith.constant 0 : i32
    %c0_i32_0 = arith.constant 0 : i32
    return %arg0, %c0_i32 : i32, i32
  }
  func.func @transform_1(%arg0: i32) -> (i32, i32) {
    %c0_i32 = arith.constant 0 : i32
    %c0_i32_0 = arith.constant 0 : i32
    %c0_i32_1 = arith.constant 0 : i32
    return %c0_i32, %c0_i32_0 : i32, i32
  }
  func.func @transform_2(%arg0: i32) -> (i32, i32) {
    %c0_i32 = arith.constant 0 : i32
    %c0_i32_0 = arith.constant 0 : i32
    %c0_i32_1 = arith.constant 0 : i32
    return %c0_i32, %c0_i32_0 : i32, i32
  }
  func.func @transform_3(%arg0: i32) -> (i32, i32) {
    %c0_i32 = arith.constant 0 : i32
    %c0_i32_0 = arith.constant 0 : i32
    %c0_i32_1 = arith.constant 0 : i32
    return %c0_i32, %c0_i32_0 : i32, i32
  }
  func.func @transform_4(%arg0: i32) -> (i32, i32) {
    %c0_i32 = arith.constant 0 : i32
    %c0_i32_0 = arith.constant 0 : i32
    return %arg0, %c0_i32 : i32, i32
  }
  func.func @transform_5(%arg0: i32) -> (i32, i32) {
    %c0_i32 = arith.constant 0 : i32
    %c0_i32_0 = arith.constant 0 : i32
    return %arg0, %c0_i32 : i32, i32
  }
  func.func @transform_6(%arg0: i32) -> (i32, i32) {
    %c0_i32 = arith.constant 0 : i32
    %c0_i32_0 = arith.constant 0 : i32
    return %arg0, %c0_i32 : i32, i32
  }
}

</mosaic_0001>

<llo_original>
// kernel: tpu_custom_call.1
$region0: #{tpu_custom_call.1}
  #allocation0 [shape = 'u32[]', space=smem, size = 0x4, offset = 0x4, fixed_abs, tag = 'smem constant byte address 0x4 - core index']
  #allocation1 [shape = 'u32[144,128]{1,0:T(1,128)}', space=vmem, size = 0x12000, scoped, tag = 'internal scratch']
  %s0 = inlined_call_operand.vmem [shape: f32[256,16], index: 0, kind: input, shape index: {}]
  %s1 = inlined_call_operand.vmem [shape: f32[16,32], index: 1, kind: input, shape index: {}]
  %s2 = inlined_call_operand.vmem [shape: f32[32,1], index: 2, kind: input, shape index: {}]
  %s3 = inlined_call_operand.vmem [shape: f32[32,1], index: 3, kind: input, shape index: {}]
  %s4 = inlined_call_operand.vmem [shape: bf16[256,32], index: 4, kind: output, shape index: {0}]
  %s5 = inlined_call_operand.vmem [shape: f32[256,1], index: 5, kind: output, shape index: {1}]
  %s6 = inlined_call_operand.vmem [shape: f32[256,1], index: 6, kind: output, shape index: {2}]
  %7 = xla_tuple %s4, %s5, %s6
  %s8 = sld [smem:[#allocation0]]
  $region65: #{tpu_custom_call.1} parent=0
    _
  %s10 = ssub.s32 1, %s8
  %s11 = scalar_select 0, %s10, %s8
  loop: start=0, step=1, limit=4
  $region2: #{tpu_custom_call.1} parent=0 // loop_pre_header
    _
  $region3: #{tpu_custom_call.1} parent=0 // loop_header
    %s13 = sphi 0, %s17
    %p14 = scmp.ge.s32.totalorder %s13, 4
    %s23 = sphi 0, %s25
    %s26 = sphi 0, %s23
    %s27 = sphi 0, %s26
    %s43 = sphi 0, %s27
    %s47 = sphi 0, %s47
    %s49 = sphi 0, %s47
    %s50 = sphi 0, %s49
    %s64 = sphi 0, %s50
    %s68 = sphi 0, %s68
    %s70 = sphi 0, %s68
    %s71 = sphi 0, %s70
    %s85 = sphi 0, %s71
    %s89 = sphi 0, %s89
    %s91 = sphi 0, %s89
    %s92 = sphi 0, %s91
    %s106 = sphi 0, %s92
    %s112 = sphi 0, %s114
    %s115 = sphi 0, %s112
    %s116 = sphi 0, %s115
    %s132 = sphi 0, %s116
    %s138 = sphi 0, %s140
    %s141 = sphi 0, %s138
    %s142 = sphi 0, %s141
    %s158 = sphi 0, %s142
    %s164 = sphi 0, %s166
    %s167 = sphi 0, %s164
    %s168 = sphi 0, %s167
    %s184 = sphi 0, %s168
  $region4: #{tpu_custom_call.1} parent=0 // loop_header_branch
    %16 = sbr.rel (%p14) target = $region8
  $region5: #{tpu_custom_call.1} parent=0 // loop_body
    %s18 = ssub.s32 %s13, 1
    %s19 = ssub.s32 %s13, 2
    %s20 = sadd.s32 %s13, 1
    %s21 = ssub.s32 %s13, %s20
    %p22 = scmp.eq.s32.totalorder %s21, 0
    %s24 = sadd.s32 %s23, 1
    %s25 = scalar_select %p22, %s23, %s24
    %p28 = pneg %p22
    %p29 = scmp.eq.s32.totalorder %s13, 1
    %p30 = por %p28, %p29
    %p31 = scmp.ne.s32.totalorder %s23, %s26
    %p32 = scmp.eq.s32.totalorder %s13, 0
    %p33 = por %p31, %p32
    %p34 = scmp.ne.s32.totalorder %s23, %s26
    %p35 = scmp.eq.s32.totalorder %s18, 1
    %p36 = por %p34, %p35
    %p37 = scmp.ne.s32.totalorder %s26, %s27
    %p38 = scmp.eq.s32.totalorder %s18, 0
    %p39 = por %p37, %p38
    %p40 = scmp.ne.s32.totalorder %s26, %s27
    %p41 = scmp.eq.s32.totalorder %s19, 1
    %p42 = por %p40, %p41
    %p44 = scmp.ne.s32.totalorder %s27, %s43
    %p45 = scmp.eq.s32.totalorder %s19, 0
    %p46 = por %p44, %p45
    %s48 = sadd.s32 %s47, 1
    %p51 = scmp.eq.s32.totalorder %s13, 1
    %p52 = scmp.ne.s32.totalorder %s47, %s49
    %p53 = scmp.eq.s32.totalorder %s13, 0
    %p54 = por %p52, %p53
    %p55 = scmp.ne.s32.totalorder %s47, %s49
    %p56 = scmp.eq.s32.totalorder %s18, 1
    %p57 = por %p55, %p56
    %p58 = scmp.ne.s32.totalorder %s49, %s50
    %p59 = scmp.eq.s32.totalorder %s18, 0
    %p60 = por %p58, %p59
    %p61 = scmp.ne.s32.totalorder %s49, %s50
    %p62 = scmp.eq.s32.totalorder %s19, 1
    %p63 = por %p61, %p62
    %p65 = scmp.ne.s32.totalorder %s50, %s64
    %p66 = scmp.eq.s32.totalorder %s19, 0
    %p67 = por %p65, %p66
    %s69 = sadd.s32 %s68, 1
    %p72 = scmp.eq.s32.totalorder %s13, 1
    %p73 = scmp.ne.s32.totalorder %s68, %s70
    %p74 = scmp.eq.s32.totalorder %s13, 0
    %p75 = por %p73, %p74
    %p76 = scmp.ne.s32.totalorder %s68, %s70
    %p77 = scmp.eq.s32.totalorder %s18, 1
    %p78 = por %p76, %p77
    %p79 = scmp.ne.s32.totalorder %s70, %s71
    %p80 = scmp.eq.s32.totalorder %s18, 0
    %p81 = por %p79, %p80
    %p82 = scmp.ne.s32.totalorder %s70, %s71
    %p83 = scmp.eq.s32.totalorder %s19, 1
    %p84 = por %p82, %p83
    %p86 = scmp.ne.s32.totalorder %s71, %s85
    %p87 = scmp.eq.s32.totalorder %s19, 0
    %p88 = por %p86, %p87
    %s90 = sadd.s32 %s89, 1
    %p93 = scmp.eq.s32.totalorder %s13, 1
    %p94 = scmp.ne.s32.totalorder %s89, %s91
    %p95 = scmp.eq.s32.totalorder %s13, 0
    %p96 = por %p94, %p95
    %p97 = scmp.ne.s32.totalorder %s89, %s91
    %p98 = scmp.eq.s32.totalorder %s18, 1
    %p99 = por %p97, %p98
    %p100 = scmp.ne.s32.totalorder %s91, %s92
    %p101 = scmp.eq.s32.totalorder %s18, 0
    %p102 = por %p100, %p101
    %p103 = scmp.ne.s32.totalorder %s91, %s92
    %p104 = scmp.eq.s32.totalorder %s19, 1
    %p105 = por %p103, %p104
    %p107 = scmp.ne.s32.totalorder %s92, %s106
    %p108 = scmp.eq.s32.totalorder %s19, 0
    %p109 = por %p107, %p108
    %s110 = ssub.s32 %s13, %s20
    %p111 = scmp.eq.s32.totalorder %s110, 0
    %s113 = sadd.s32 %s112, 1
    %s114 = scalar_select %p111, %s112, %s113
    %p117 = pneg %p111
    %p118 = scmp.eq.s32.totalorder %s13, 1
    %p119 = por %p117, %p118
    %p120 = scmp.ne.s32.totalorder %s112, %s115
    %p121 = scmp.eq.s32.totalorder %s13, 0
    %p122 = por %p120, %p121
    %p123 = scmp.ne.s32.totalorder %s112, %s115
    %p124 = scmp.eq.s32.totalorder %s18, 1
    %p125 = por %p123, %p124
    %p126 = scmp.ne.s32.totalorder %s115, %s116
    %p127 = scmp.eq.s32.totalorder %s18, 0
    %p128 = por %p126, %p127
    %p129 = scmp.ne.s32.totalorder %s115, %s116
    %p130 = scmp.eq.s32.totalorder %s19, 1
    %p131 = por %p129, %p130
    %p133 = scmp.ne.s32.totalorder %s116, %s132
    %p134 = scmp.eq.s32.totalorder %s19, 0
    %p135 = por %p133, %p134
    %s136 = ssub.s32 %s13, %s20
    %p137 = scmp.eq.s32.totalorder %s136, 0
    %s139 = sadd.s32 %s138, 1
    %s140 = scalar_select %p137, %s138, %s139
    %p143 = pneg %p137
    %p144 = scmp.eq.s32.totalorder %s13, 1
    %p145 = por %p143, %p144
    %p146 = scmp.ne.s32.totalorder %s138, %s141
    %p147 = scmp.eq.s32.totalorder %s13, 0
    %p148 = por %p146, %p147
    %p149 = scmp.ne.s32.totalorder %s138, %s141
    %p150 = scmp.eq.s32.totalorder %s18, 1
    %p151 = por %p149, %p150
    %p152 = scmp.ne.s32.totalorder %s141, %s142
    %p153 = scmp.eq.s32.totalorder %s18, 0
    %p154 = por %p152, %p153
    %p155 = scmp.ne.s32.totalorder %s141, %s142
    %p156 = scmp.eq.s32.totalorder %s19, 1
    %p157 = por %p155, %p156
    %p159 = scmp.ne.s32.totalorder %s142, %s158
    %p160 = scmp.eq.s32.totalorder %s19, 0
    %p161 = por %p159, %p160
    %s162 = ssub.s32 %s13, %s20
    %p163 = scmp.eq.s32.totalorder %s162, 0
    %s165 = sadd.s32 %s164, 1
    %s166 = scalar_select %p163, %s164, %s165
    %p169 = pneg %p163
    %p170 = scmp.eq.s32.totalorder %s13, 1
    %p171 = por %p169, %p170
    %p172 = scmp.ne.s32.totalorder %s164, %s167
    %p173 = scmp.eq.s32.totalorder %s13, 0
    %p174 = por %p172, %p173
    %p175 = scmp.ne.s32.totalorder %s164, %s167
    %p176 = scmp.eq.s32.totalorder %s18, 1
    %p177 = por %p175, %p176
    %p178 = scmp.ne.s32.totalorder %s167, %s168
    %p179 = scmp.eq.s32.totalorder %s18, 0
    %p180 = por %p178, %p179
    %p181 = scmp.ne.s32.totalorder %s167, %s168
    %p182 = scmp.eq.s32.totalorder %s19, 1
    %p183 = por %p181, %p182
    %p185 = scmp.ne.s32.totalorder %s168, %s184
    %p186 = scmp.eq.s32.totalorder %s19, 0
    %p187 = por %p185, %p186
    %p188 = scmp.le.s32.totalorder 1, %s13
    %p189 = scmp.lt.s32.totalorder %s13, 3
    %p190 = pnand %p188, %p189
    %p191 = pneg %p190
    // Predicated region
    $region9: #{tpu_custom_call.1} parent=5 // pred_check
      _
    $region10: #{tpu_custom_call.1} parent=5 // pred_check_branch
      %193 = sbr.rel (%p190) target = $region12
    $region11: #{tpu_custom_call.1} parent=5 // pred_region
      %s194 = ssub.s32 %s13, 1
      // Predicated region
      $region13: #{tpu_custom_call.1} parent=11 // pred_check
        %p195 = pneg %p60
      $region14: #{tpu_custom_call.1} parent=11 // pred_check_branch
        %197 = sbr.rel (%p195) target = $region16
      $region15: #{tpu_custom_call.1} parent=11 // pred_region
        _
      $region16: #{tpu_custom_call.1} parent=11 // pred_fallthru
        _
      // Predicated region
      $region17: #{tpu_custom_call.1} parent=11 // pred_check
        %p198 = pneg %p81
      $region18: #{tpu_custom_call.1} parent=11 // pred_check_branch
        %200 = sbr.rel (%p198) target = $region20
      $region19: #{tpu_custom_call.1} parent=11 // pred_region
        _
      $region20: #{tpu_custom_call.1} parent=11 // pred_fallthru
        _
      // Predicated region
      $region21: #{tpu_custom_call.1} parent=11 // pred_check
        %p201 = pneg %p102
      $region22: #{tpu_custom_call.1} parent=11 // pred_check_branch
        %203 = sbr.rel (%p201) target = $region24
      $region23: #{tpu_custom_call.1} parent=11 // pred_region
        _
      $region24: #{tpu_custom_call.1} parent=11 // pred_fallthru
        _
    $region12: #{tpu_custom_call.1} parent=5 // pred_fallthru
      _
    %p204 = scmp.lt.s32.totalorder %s13, 2
    // Predicated region
    $region25: #{tpu_custom_call.1} parent=5 // pred_check
      %p205 = pneg %p204
    $region26: #{tpu_custom_call.1} parent=5 // pred_check_branch
      %207 = sbr.rel (%p205) target = $region28
    $region27: #{tpu_custom_call.1} parent=5 // pred_region
      // Predicated region
      $region29: #{tpu_custom_call.1} parent=27 // pred_check
        %p208 = pneg %p33
      $region30: #{tpu_custom_call.1} parent=27 // pred_check_branch
        %210 = sbr.rel (%p208) target = $region32
      $region31: #{tpu_custom_call.1} parent=27 // pred_region
        %s211 = smul.u32 16, %s13
        %p212 = scmp.lt.s32.totalorder %s211, 31
        %s213 = scalar_select %p212, %s211, 31
        %s214 = smul.addr %s213, 8
        %s215 = scalar_lea.vmem %s0, %s214
        %s216 = smul.u32 16, %s13
      $region32: #{tpu_custom_call.1} parent=27 // pred_fallthru
        _
    $region28: #{tpu_custom_call.1} parent=5 // pred_fallthru
      _
    %p217 = scmp.le.s32.totalorder 1, %s13
    %p218 = scmp.lt.s32.totalorder %s13, 3
    %p219 = pnand %p217, %p218
    %p220 = pneg %p219
    // Predicated region
    $region33: #{tpu_custom_call.1} parent=5 // pred_check
      _
    $region34: #{tpu_custom_call.1} parent=5 // pred_check_branch
      %222 = sbr.rel (%p219) target = $region36
    $region35: #{tpu_custom_call.1} parent=5 // pred_region
      %s223 = ssub.s32 %s13, 1
      %s224 = smul.u32 16, %s18
      %p225 = scmp.lt.s32.totalorder %s224, 31
      %s226 = scalar_select %p225, %s224, 31
      %s227 = smul.addr %s226, 8
      %s228 = scalar_lea.vmem %s0, %s227
      %p229 = pneg %p39
      %p230 = pneg %p36
      %p231 = pneg %p60
      %p232 = pneg %p57
      %p233 = pneg %p81
      %p234 = pneg %p78
      %p235 = pneg %p102
      %p236 = pneg %p99
      %p237 = pneg %p128
      %p238 = pneg %p125
      %s239 = smul.u32 16, %s18
      %p240 = scmp.lt.s32.totalorder %s239, 31
      %s241 = scalar_select %p240, %s239, 31
      %s242 = smul.addr %s241, 4
      %s243 = scalar_lea.vmem %s4, %s242
      %p244 = pneg %p154
      %p245 = pneg %p151
      %s246 = smul.u32 16, %s18
      %p247 = scmp.lt.s32.totalorder %s246, 31
      %s248 = scalar_select %p247, %s246, 31
      %s249 = smul.addr %s248, 8
      %s250 = scalar_lea.vmem %s5, %s249
      %p251 = pneg %p180
      %p252 = pneg %p177
      %s253 = smul.u32 16, %s18
      %p254 = scmp.lt.s32.totalorder %s253, 31
      %s255 = scalar_select %p254, %s253, 31
      %s256 = smul.addr %s255, 8
      %s257 = scalar_lea.vmem %s6, %s256
      %s258 = smul.u32 16, %s18
      %p259 = scmp.lt.s32.totalorder %s258, 31
      %s260 = scalar_select %p259, %s258, 31
      %s261 = smul.addr %s260, 8
      %s262 = scalar_lea.vmem %s0, %s261
      %s263 = smul.u32 16, %s18
      %s264 = smul.u32 16, %s18
      %p265 = scmp.lt.s32.totalorder %s264, 31
      %s266 = scalar_select %p265, %s264, 31
      %s267 = smul.addr %s266, 4
      %s268 = scalar_lea.vmem %s4, %s267
      %s269 = smul.u32 16, %s18
      %s270 = smul.u32 16, %s18
      %p271 = scmp.lt.s32.totalorder %s270, 31
      %s272 = scalar_select %p271, %s270, 31
      %s273 = smul.addr %s272, 8
      %s274 = scalar_lea.vmem %s5, %s273
      %s275 = smul.u32 16, %s18
      %s276 = smul.u32 16, %s18
      %p277 = scmp.lt.s32.totalorder %s276, 31
      %s278 = scalar_select %p277, %s276, 31
      %s279 = smul.addr %s278, 8
      %s280 = scalar_lea.vmem %s6, %s279
      %s281 = smul.u32 16, %s18
      %v282 = vld [vmem:[%s262] sm:$0xff]
      %v283 = vld [vmem:[%s262 + $0x8] sm:$0xff]
      %v284 = vld [vmem:[%s262 + $0x10] sm:$0xff]
      %v285 = vld [vmem:[%s262 + $0x18] sm:$0xff]
      %v286 = vld [vmem:[%s262 + $0x20] sm:$0xff]
      %v287 = vld [vmem:[%s262 + $0x28] sm:$0xff]
      %v288 = vld [vmem:[%s262 + $0x30] sm:$0xff]
      %v289 = vld [vmem:[%s262 + $0x38] sm:$0xff]
      %v290 = vld [vmem:[%s262 + $0x40] sm:$0xff]
      %v291 = vld [vmem:[%s262 + $0x48] sm:$0xff]
      %v292 = vld [vmem:[%s262 + $0x50] sm:$0xff]
      %v293 = vld [vmem:[%s262 + $0x58] sm:$0xff]
      %v294 = vld [vmem:[%s262 + $0x60] sm:$0xff]
      %v295 = vld [vmem:[%s262 + $0x68] sm:$0xff]
      %v296 = vld [vmem:[%s262 + $0x70] sm:$0xff]
      %v297 = vld [vmem:[%s262 + $0x78] sm:$0xff]
      %v298 = vld [vmem:[%s1] sm:$0xff]
      %v299 = vld [vmem:[%s1 + $0x8] sm:$0xff]
      %vm300 = vcmask 130048
      %v302 = vsel %vm300, %v282, 0
      %v305 = vsel %vm300, %v283, 0
      %v308 = vsel %vm300, %v284, 0
      %v311 = vsel %vm300, %v285, 0
      %v314 = vsel %vm300, %v286, 0
      %v317 = vsel %vm300, %v287, 0
      %v320 = vsel %vm300, %v288, 0
      %v323 = vsel %vm300, %v289, 0
      %v326 = vsel %vm300, %v290, 0
      %v329 = vsel %vm300, %v291, 0
      %v332 = vsel %vm300, %v292, 0
      %v335 = vsel %vm300, %v293, 0
      %v338 = vsel %vm300, %v294, 0
      %v341 = vsel %vm300, %v295, 0
      %v344 = vsel %vm300, %v296, 0
      %v347 = vsel %vm300, %v297, 0
      %349 = vmatprep.subr.mxu0 0.0
      %350 = vmatpush1.msra.mxu0 0.0
      %351 = vmatprep.subr.mxu0 0.0
      %352 = vmatpush1.msra.mxu0 0.0
      %353 = vmatprep.subr.mxu0 0.0
      %354 = vmatpush1.msra.mxu0 0.0
      %355 = vmatprep.subr.mxu0 0.0
      %356 = vmatpush1.msra.mxu0 0.0
      %357 = vmatprep.subr.mxu0 0.0
      %358 = vmatpush1.msra.mxu0 0.0
      %359 = vmatprep.subr.mxu0 0.0
      %360 = vmatpush1.msra.mxu0 0.0
      %361 = vmatprep.subr.mxu0 0.0
      %362 = vmatpush1.msra.mxu0 0.0
      %363 = vmatprep.subr.mxu0 0.0
      %364 = vmatpush1.msra.mxu0 0.0
      %365 = vmatprep.subr.mxu0 0.0
      %366 = vmatpush1.msra.mxu0 0.0
      %367 = vmatprep.subr.mxu0 0.0
      %368 = vmatpush1.msra.mxu0 0.0
      %369 = vmatprep.subr.mxu0 0.0
      %370 = vmatpush1.msra.mxu0 0.0
      %371 = vmatprep.subr.mxu0 0.0
      %372 = vmatpush1.msra.mxu0 0.0
      %373 = vmatprep.subr.mxu0 0.0
      %374 = vmatpush1.msra.mxu0 0.0
      %375 = vmatprep.subr.mxu0 0.0
      %376 = vmatpush1.msra.mxu0 0.0
      %377 = vmatprep.subr.mxu0 0.0
      %378 = vmatpush1.msra.mxu0 %v299
      %379 = vmatprep.subr.mxu0 0.0
      %380 = vmatpush1.msra.mxu0 %v298
      %381 = vmatprep.subr.mxu0 0.0
      %382 = vmatpush2.msra.mxu0 0.0
      %383 = vmatprep.subr.mxu0 0.0
      %384 = vmatpush2.msra.mxu0 0.0
      %385 = vmatprep.subr.mxu0 0.0
      %386 = vmatpush2.msra.mxu0 0.0
      %387 = vmatprep.subr.mxu0 0.0
      %388 = vmatpush2.msra.mxu0 0.0
      %389 = vmatprep.subr.mxu0 0.0
      %390 = vmatpush2.msra.mxu0 0.0
      %391 = vmatprep.subr.mxu0 0.0
      %392 = vmatpush2.msra.mxu0 0.0
      %393 = vmatprep.subr.mxu0 0.0
      %394 = vmatpush2.msra.mxu0 0.0
      %395 = vmatprep.subr.mxu0 0.0
      %396 = vmatpush2.msra.mxu0 0.0
      %397 = vmatprep.subr.mxu0 0.0
      %398 = vmatpush2.msra.mxu0 0.0
      %399 = vmatprep.subr.mxu0 0.0
      %400 = vmatpush2.msra.mxu0 0.0
      %401 = vmatprep.subr.mxu0 0.0
      %402 = vmatpush2.msra.mxu0 0.0
      %403 = vmatprep.subr.mxu0 0.0
      %404 = vmatpush2.msra.mxu0 0.0
      %405 = vmatprep.subr.mxu0 0.0
      %406 = vmatpush2.msra.mxu0 0.0
      %407 = vmatprep.subr.mxu0 0.0
      %408 = vmatpush2.msra.mxu0 0.0
      %409 = vmatprep.subr.mxu0 0.0
      %410 = vmatpush2.msra.mxu0 0.0
      %411 = vmatprep.subr.mxu0 0.0
      %412 = vmatpush2.msra.mxu0 0.0
      %413 = vmatprep.mubr.f32.mxu0 0.0
      %414 = vmatmul.mubr.f32.gmra.mxu0 %v302
      %v415 = vpop.f32.mrf.mxu0
      %v416 = vadd.f32 0.0, %v415
      %v417 = vpop.f32.mrf.mxu0
      %418 = vmatprep.mubr.f32.mxu0 0.0
      %419 = vmatmul.mubr.f32.gmra.mxu0 %v305
      %v420 = vpop.f32.mrf.mxu0
      %v421 = vadd.f32 0.0, %v420
      %v422 = vpop.f32.mrf.mxu0
      %423 = vmatprep.mubr.f32.mxu0 0.0
      %424 = vmatmul.mubr.f32.gmra.mxu0 %v308
      %v425 = vpop.f32.mrf.mxu0
      %v426 = vadd.f32 0.0, %v425
      %v427 = vpop.f32.mrf.mxu0
      %428 = vmatprep.mubr.f32.mxu0 0.0
      %429 = vmatmul.mubr.f32.gmra.mxu0 %v311
      %v430 = vpop.f32.mrf.mxu0
      %v431 = vadd.f32 0.0, %v430
      %v432 = vpop.f32.mrf.mxu0
      %433 = vmatprep.mubr.f32.mxu0 0.0
      %434 = vmatmul.mubr.f32.gmra.mxu0 %v314
      %v435 = vpop.f32.mrf.mxu0
      %v436 = vadd.f32 0.0, %v435
      %v437 = vpop.f32.mrf.mxu0
      %438 = vmatprep.mubr.f32.mxu0 0.0
      %439 = vmatmul.mubr.f32.gmra.mxu0 %v317
      %v440 = vpop.f32.mrf.mxu0
      %v441 = vadd.f32 0.0, %v440
      %v442 = vpop.f32.mrf.mxu0
      %443 = vmatprep.mubr.f32.mxu0 0.0
      %444 = vmatmul.mubr.f32.gmra.mxu0 %v320
      %v445 = vpop.f32.mrf.mxu0
      %v446 = vadd.f32 0.0, %v445
      %v447 = vpop.f32.mrf.mxu0
      %448 = vmatprep.mubr.f32.mxu0 0.0
      %449 = vmatmul.mubr.f32.gmra.mxu0 %v323
      %v450 = vpop.f32.mrf.mxu0
      %v451 = vadd.f32 0.0, %v450
      %v452 = vpop.f32.mrf.mxu0
      %453 = vmatprep.mubr.f32.mxu0 0.0
      %454 = vmatmul.mubr.f32.gmra.mxu0 %v326
      %v455 = vpop.f32.mrf.mxu0
      %v456 = vadd.f32 0.0, %v455
      %v457 = vpop.f32.mrf.mxu0
      %458 = vmatprep.mubr.f32.mxu0 0.0
      %459 = vmatmul.mubr.f32.gmra.mxu0 %v329
      %v460 = vpop.f32.mrf.mxu0
      %v461 = vadd.f32 0.0, %v460
      %v462 = vpop.f32.mrf.mxu0
      %463 = vmatprep.mubr.f32.mxu0 0.0
      %464 = vmatmul.mubr.f32.gmra.mxu0 %v332
      %v465 = vpop.f32.mrf.mxu0
      %v466 = vadd.f32 0.0, %v465
      %v467 = vpop.f32.mrf.mxu0
      %468 = vmatprep.mubr.f32.mxu0 0.0
      %469 = vmatmul.mubr.f32.gmra.mxu0 %v335
      %v470 = vpop.f32.mrf.mxu0
      %v471 = vadd.f32 0.0, %v470
      %v472 = vpop.f32.mrf.mxu0
      %473 = vmatprep.mubr.f32.mxu0 0.0
      %474 = vmatmul.mubr.f32.gmra.mxu0 %v338
      %v475 = vpop.f32.mrf.mxu0
      %v476 = vadd.f32 0.0, %v475
      %v477 = vpop.f32.mrf.mxu0
      %478 = vmatprep.mubr.f32.mxu0 0.0
      %479 = vmatmul.mubr.f32.gmra.mxu0 %v341
      %v480 = vpop.f32.mrf.mxu0
      %v481 = vadd.f32 0.0, %v480
      %v482 = vpop.f32.mrf.mxu0
      %483 = vmatprep.mubr.f32.mxu0 0.0
      %484 = vmatmul.mubr.f32.gmra.mxu0 %v344
      %v485 = vpop.f32.mrf.mxu0
      %v486 = vadd.f32 0.0, %v485
      %v487 = vpop.f32.mrf.mxu0
      %488 = vmatprep.mubr.f32.mxu0 0.0
      %489 = vmatmul.mubr.f32.gmra.mxu0 %v347
      %v490 = vpop.f32.mrf.mxu0
      %v491 = vadd.f32 0.0, %v490
      %v492 = vpop.f32.mrf.mxu0
      %493 = vdwg.mxu0
      %v494 = vpack.c.bf16 %v421, %v416
      %v495 = vpack.c.bf16 %v431, %v426
      %v496 = vpack.c.bf16 %v441, %v436
      %v497 = vpack.c.bf16 %v451, %v446
      %v498 = vpack.c.bf16 %v461, %v456
      %v499 = vpack.c.bf16 %v471, %v466
      %v500 = vpack.c.bf16 %v481, %v476
      %v501 = vpack.c.bf16 %v491, %v486
      %v510 = vunpack.c.l.b16 %v494
      %v511 = vunpack.c.h.b16 %v494
      %v512 = vunpack.c.l.b16 %v495
      %v513 = vunpack.c.h.b16 %v495
      %v514 = vunpack.c.l.b16 %v496
      %v515 = vunpack.c.h.b16 %v496
      %v516 = vunpack.c.l.b16 %v497
      %v517 = vunpack.c.h.b16 %v497
      %v518 = vunpack.c.l.b16 %v498
      %v519 = vunpack.c.h.b16 %v498
      %v520 = vunpack.c.l.b16 %v499
      %v521 = vunpack.c.h.b16 %v499
      %v522 = vunpack.c.l.b16 %v500
      %v523 = vunpack.c.h.b16 %v500
      %v524 = vunpack.c.l.b16 %v501
      %v525 = vunpack.c.h.b16 %v501
      %v526 = vpack.c.b16 %v510, %v510
      %v527 = vpack.c.b16 %v511, %v511
      %v528 = vpack.c.b16 %v512, %v512
      %v529 = vpack.c.b16 %v513, %v513
      %v530 = vpack.c.b16 %v514, %v514
      %v531 = vpack.c.b16 %v515, %v515
      %v532 = vpack.c.b16 %v516, %v516
      %v533 = vpack.c.b16 %v517, %v517
      %v534 = vpack.c.b16 %v518, %v518
      %v535 = vpack.c.b16 %v519, %v519
      %v536 = vpack.c.b16 %v520, %v520
      %v537 = vpack.c.b16 %v521, %v521
      %v538 = vpack.c.b16 %v522, %v522
      %v539 = vpack.c.b16 %v523, %v523
      %v540 = vpack.c.b16 %v524, %v524
      %v541 = vpack.c.b16 %v525, %v525
      %vm558 = vcmask 257024
      %559 = vst.msk [vmem:[%s268] sm:$0xf] %vm558, %v526
      %560 = vst.msk [vmem:[%s268 + $0x4] sm:$0xf] %vm558, %v527
      %561 = vst.msk [vmem:[%s268 + $0x8] sm:$0xf] %vm558, %v528
      %562 = vst.msk [vmem:[%s268 + $0xc] sm:$0xf] %vm558, %v529
      %563 = vst.msk [vmem:[%s268 + $0x10] sm:$0xf] %vm558, %v530
      %564 = vst.msk [vmem:[%s268 + $0x14] sm:$0xf] %vm558, %v531
      %565 = vst.msk [vmem:[%s268 + $0x18] sm:$0xf] %vm558, %v532
      %566 = vst.msk [vmem:[%s268 + $0x1c] sm:$0xf] %vm558, %v533
      %567 = vst.msk [vmem:[%s268 + $0x20] sm:$0xf] %vm558, %v534
      %568 = vst.msk [vmem:[%s268 + $0x24] sm:$0xf] %vm558, %v535
      %569 = vst.msk [vmem:[%s268 + $0x28] sm:$0xf] %vm558, %v536
      %570 = vst.msk [vmem:[%s268 + $0x2c] sm:$0xf] %vm558, %v537
      %571 = vst.msk [vmem:[%s268 + $0x30] sm:$0xf] %vm558, %v538
      %572 = vst.msk [vmem:[%s268 + $0x34] sm:$0xf] %vm558, %v539
      %573 = vst.msk [vmem:[%s268 + $0x38] sm:$0xf] %vm558, %v540
      %574 = vst.msk [vmem:[%s268 + $0x3c] sm:$0xf] %vm558, %v541
      %v575 = vld [vmem:[%s2] sm:$0xff]
      %v576 = vld [vmem:[%s2 + $0x8] sm:$0xff]
      %v577 = vld [vmem:[%s2 + $0x10] sm:$0xff]
      %v578 = vld [vmem:[%s2 + $0x18] sm:$0xff]
      %vm579 = vcmask 261120
      %v581 = vsel %vm579, %v416, 0
      %v584 = vsel %vm579, %v421, 0
      %v587 = vsel %vm579, %v426, 0
      %v590 = vsel %vm579, %v431, 0
      %v593 = vsel %vm579, %v436, 0
      %v596 = vsel %vm579, %v441, 0
      %v599 = vsel %vm579, %v446, 0
      %v602 = vsel %vm579, %v451, 0
      %v605 = vsel %vm579, %v456, 0
      %v608 = vsel %vm579, %v461, 0
      %v611 = vsel %vm579, %v466, 0
      %v614 = vsel %vm579, %v471, 0
      %v617 = vsel %vm579, %v476, 0
      %v620 = vsel %vm579, %v481, 0
      %v623 = vsel %vm579, %v486, 0
      %v626 = vsel %vm579, %v491, 0
      %628 = vmatprep.subr.mxu0 0.0
      %629 = vmatpush1.msra.mxu0 0.0
      %630 = vmatprep.subr.mxu0 0.0
      %631 = vmatpush1.msra.mxu0 0.0
      %632 = vmatprep.subr.mxu0 0.0
      %633 = vmatpush1.msra.mxu0 0.0
      %634 = vmatprep.subr.mxu0 0.0
      %635 = vmatpush1.msra.mxu0 0.0
      %636 = vmatprep.subr.mxu0 0.0
      %637 = vmatpush1.msra.mxu0 0.0
      %638 = vmatprep.subr.mxu0 0.0
      %639 = vmatpush1.msra.mxu0 0.0
      %640 = vmatprep.subr.mxu0 0.0
      %641 = vmatpush1.msra.mxu0 0.0
      %642 = vmatprep.subr.mxu0 0.0
      %643 = vmatpush1.msra.mxu0 0.0
      %644 = vmatprep.subr.mxu0 0.0
      %645 = vmatpush1.msra.mxu0 0.0
      %646 = vmatprep.subr.mxu0 0.0
      %647 = vmatpush1.msra.mxu0 0.0
      %648 = vmatprep.subr.mxu0 0.0
      %649 = vmatpush1.msra.mxu0 0.0
      %650 = vmatprep.subr.mxu0 0.0
      %651 = vmatpush1.msra.mxu0 0.0
      %652 = vmatprep.subr.mxu0 0.0
      %653 = vmatpush1.msra.mxu0 %v578
      %654 = vmatprep.subr.mxu0 0.0
      %655 = vmatpush1.msra.mxu0 %v577
      %656 = vmatprep.subr.mxu0 0.0
      %657 = vmatpush1.msra.mxu0 %v576
      %658 = vmatprep.subr.mxu0 0.0
      %659 = vmatpush1.msra.mxu0 %v575
      %660 = vmatprep.subr.mxu0 0.0
      %661 = vmatpush2.msra.mxu0 0.0
      %662 = vmatprep.subr.mxu0 0.0
      %663 = vmatpush2.msra.mxu0 0.0
      %664 = vmatprep.subr.mxu0 0.0
      %665 = vmatpush2.msra.mxu0 0.0
      %666 = vmatprep.subr.mxu0 0.0
      %667 = vmatpush2.msra.mxu0 0.0
      %668 = vmatprep.subr.mxu0 0.0
      %669 = vmatpush2.msra.mxu0 0.0
      %670 = vmatprep.subr.mxu0 0.0
      %671 = vmatpush2.msra.mxu0 0.0
      %672 = vmatprep.subr.mxu0 0.0
      %673 = vmatpush2.msra.mxu0 0.0
      %674 = vmatprep.subr.mxu0 0.0
      %675 = vmatpush2.msra.mxu0 0.0
      %676 = vmatprep.subr.mxu0 0.0
      %677 = vmatpush2.msra.mxu0 0.0
      %678 = vmatprep.subr.mxu0 0.0
      %679 = vmatpush2.msra.mxu0 0.0
      %680 = vmatprep.subr.mxu0 0.0
      %681 = vmatpush2.msra.mxu0 0.0
      %682 = vmatprep.subr.mxu0 0.0
      %683 = vmatpush2.msra.mxu0 0.0
      %684 = vmatprep.subr.mxu0 0.0
      %685 = vmatpush2.msra.mxu0 0.0
      %686 = vmatprep.subr.mxu0 0.0
      %687 = vmatpush2.msra.mxu0 0.0
      %688 = vmatprep.subr.mxu0 0.0
      %689 = vmatpush2.msra.mxu0 0.0
      %690 = vmatprep.subr.mxu0 0.0
      %691 = vmatpush2.msra.mxu0 0.0
      %692 = vmatprep.mubr.f32.mxu0 0.0
      %693 = vmatmul.mubr.f32.gmra.mxu0 %v581
      %v694 = vpop.f32.mrf.mxu0
      %v695 = vadd.f32 0.0, %v694
      %v696 = vpop.f32.mrf.mxu0
      %697 = vmatprep.mubr.f32.mxu0 0.0
      %698 = vmatmul.mubr.f32.gmra.mxu0 %v584
      %v699 = vpop.f32.mrf.mxu0
      %v700 = vadd.f32 0.0, %v699
      %v701 = vpop.f32.mrf.mxu0
      %702 = vmatprep.mubr.f32.mxu0 0.0
      %703 = vmatmul.mubr.f32.gmra.mxu0 %v587
      %v704 = vpop.f32.mrf.mxu0
      %v705 = vadd.f32 0.0, %v704
      %v706 = vpop.f32.mrf.mxu0
      %707 = vmatprep.mubr.f32.mxu0 0.0
      %708 = vmatmul.mubr.f32.gmra.mxu0 %v590
      %v709 = vpop.f32.mrf.mxu0
      %v710 = vadd.f32 0.0, %v709
      %v711 = vpop.f32.mrf.mxu0
      %712 = vmatprep.mubr.f32.mxu0 0.0
      %713 = vmatmul.mubr.f32.gmra.mxu0 %v593
      %v714 = vpop.f32.mrf.mxu0
      %v715 = vadd.f32 0.0, %v714
      %v716 = vpop.f32.mrf.mxu0
      %717 = vmatprep.mubr.f32.mxu0 0.0
      %718 = vmatmul.mubr.f32.gmra.mxu0 %v596
      %v719 = vpop.f32.mrf.mxu0
      %v720 = vadd.f32 0.0, %v719
      %v721 = vpop.f32.mrf.mxu0
      %722 = vmatprep.mubr.f32.mxu0 0.0
      %723 = vmatmul.mubr.f32.gmra.mxu0 %v599
      %v724 = vpop.f32.mrf.mxu0
      %v725 = vadd.f32 0.0, %v724
      %v726 = vpop.f32.mrf.mxu0
      %727 = vmatprep.mubr.f32.mxu0 0.0
      %728 = vmatmul.mubr.f32.gmra.mxu0 %v602
      %v729 = vpop.f32.mrf.mxu0
      %v730 = vadd.f32 0.0, %v729
      %v731 = vpop.f32.mrf.mxu0
      %732 = vmatprep.mubr.f32.mxu0 0.0
      %733 = vmatmul.mubr.f32.gmra.mxu0 %v605
      %v734 = vpop.f32.mrf.mxu0
      %v735 = vadd.f32 0.0, %v734
      %v736 = vpop.f32.mrf.mxu0
      %737 = vmatprep.mubr.f32.mxu0 0.0
      %738 = vmatmul.mubr.f32.gmra.mxu0 %v608
      %v739 = vpop.f32.mrf.mxu0
      %v740 = vadd.f32 0.0, %v739
      %v741 = vpop.f32.mrf.mxu0
      %742 = vmatprep.mubr.f32.mxu0 0.0
      %743 = vmatmul.mubr.f32.gmra.mxu0 %v611
      %v744 = vpop.f32.mrf.mxu0
      %v745 = vadd.f32 0.0, %v744
      %v746 = vpop.f32.mrf.mxu0
      %747 = vmatprep.mubr.f32.mxu0 0.0
      %748 = vmatmul.mubr.f32.gmra.mxu0 %v614
      %v749 = vpop.f32.mrf.mxu0
      %v750 = vadd.f32 0.0, %v749
      %v751 = vpop.f32.mrf.mxu0
      %752 = vmatprep.mubr.f32.mxu0 0.0
      %753 = vmatmul.mubr.f32.gmra.mxu0 %v617
      %v754 = vpop.f32.mrf.mxu0
      %v755 = vadd.f32 0.0, %v754
      %v756 = vpop.f32.mrf.mxu0
      %757 = vmatprep.mubr.f32.mxu0 0.0
      %758 = vmatmul.mubr.f32.gmra.mxu0 %v620
      %v759 = vpop.f32.mrf.mxu0
      %v760 = vadd.f32 0.0, %v759
      %v761 = vpop.f32.mrf.mxu0
      %762 = vmatprep.mubr.f32.mxu0 0.0
      %763 = vmatmul.mubr.f32.gmra.mxu0 %v623
      %v764 = vpop.f32.mrf.mxu0
      %v765 = vadd.f32 0.0, %v764
      %v766 = vpop.f32.mrf.mxu0
      %767 = vmatprep.mubr.f32.mxu0 0.0
      %768 = vmatmul.mubr.f32.gmra.mxu0 %v626
      %v769 = vpop.f32.mrf.mxu0
      %v770 = vadd.f32 0.0, %v769
      %v771 = vpop.f32.mrf.mxu0
      %772 = vdwg.mxu0
      %vm773 = vcmask 7168
      %774 = vst.msk [vmem:[%s274] sm:$0xff] %vm773, %v695
      %775 = vst.msk [vmem:[%s274 + $0x8] sm:$0xff] %vm773, %v700
      %776 = vst.msk [vmem:[%s274 + $0x10] sm:$0xff] %vm773, %v705
      %777 = vst.msk [vmem:[%s274 + $0x18] sm:$0xff] %vm773, %v710
      %778 = vst.msk [vmem:[%s274 + $0x20] sm:$0xff] %vm773, %v715
      %779 = vst.msk [vmem:[%s274 + $0x28] sm:$0xff] %vm773, %v720
      %780 = vst.msk [vmem:[%s274 + $0x30] sm:$0xff] %vm773, %v725
      %781 = vst.msk [vmem:[%s274 + $0x38] sm:$0xff] %vm773, %v730
      %782 = vst.msk [vmem:[%s274 + $0x40] sm:$0xff] %vm773, %v735
      %783 = vst.msk [vmem:[%s274 + $0x48] sm:$0xff] %vm773, %v740
      %784 = vst.msk [vmem:[%s274 + $0x50] sm:$0xff] %vm773, %v745
      %785 = vst.msk [vmem:[%s274 + $0x58] sm:$0xff] %vm773, %v750
      %786 = vst.msk [vmem:[%s274 + $0x60] sm:$0xff] %vm773, %v755
      %787 = vst.msk [vmem:[%s274 + $0x68] sm:$0xff] %vm773, %v760
      %788 = vst.msk [vmem:[%s274 + $0x70] sm:$0xff] %vm773, %v765
      %789 = vst.msk [vmem:[%s274 + $0x78] sm:$0xff] %vm773, %v770
      %v790 = vld [vmem:[%s3] sm:$0xff]
      %v791 = vld [vmem:[%s3 + $0x8] sm:$0xff]
      %v792 = vld [vmem:[%s3 + $0x10] sm:$0xff]
      %v793 = vld [vmem:[%s3 + $0x18] sm:$0xff]
      %794 = vmatprep.subr.mxu0 0.0
      %795 = vmatpush1.msra.mxu0 0.0
      %796 = vmatprep.subr.mxu0 0.0
      %797 = vmatpush1.msra.mxu0 0.0
      %798 = vmatprep.subr.mxu0 0.0
      %799 = vmatpush1.msra.mxu0 0.0
      %800 = vmatprep.subr.mxu0 0.0
      %801 = vmatpush1.msra.mxu0 0.0
      %802 = vmatprep.subr.mxu0 0.0
      %803 = vmatpush1.msra.mxu0 0.0
      %804 = vmatprep.subr.mxu0 0.0
      %805 = vmatpush1.msra.mxu0 0.0
      %806 = vmatprep.subr.mxu0 0.0
      %807 = vmatpush1.msra.mxu0 0.0
      %808 = vmatprep.subr.mxu0 0.0
      %809 = vmatpush1.msra.mxu0 0.0
      %810 = vmatprep.subr.mxu0 0.0
      %811 = vmatpush1.msra.mxu0 0.0
      %812 = vmatprep.subr.mxu0 0.0
      %813 = vmatpush1.msra.mxu0 0.0
      %814 = vmatprep.subr.mxu0 0.0
      %815 = vmatpush1.msra.mxu0 0.0
      %816 = vmatprep.subr.mxu0 0.0
      %817 = vmatpush1.msra.mxu0 0.0
      %818 = vmatprep.subr.mxu0 0.0
      %819 = vmatpush1.msra.mxu0 %v793
      %820 = vmatprep.subr.mxu0 0.0
      %821 = vmatpush1.msra.mxu0 %v792
      %822 = vmatprep.subr.mxu0 0.0
      %823 = vmatpush1.msra.mxu0 %v791
      %824 = vmatprep.subr.mxu0 0.0
      %825 = vmatpush1.msra.mxu0 %v790
      %826 = vmatprep.subr.mxu0 0.0
      %827 = vmatpush2.msra.mxu0 0.0
      %828 = vmatprep.subr.mxu0 0.0
      %829 = vmatpush2.msra.mxu0 0.0
      %830 = vmatprep.subr.mxu0 0.0
      %831 = vmatpush2.msra.mxu0 0.0
      %832 = vmatprep.subr.mxu0 0.0
      %833 = vmatpush2.msra.mxu0 0.0
      %834 = vmatprep.subr.mxu0 0.0
      %835 = vmatpush2.msra.mxu0 0.0
      %836 = vmatprep.subr.mxu0 0.0
      %837 = vmatpush2.msra.mxu0 0.0
      %838 = vmatprep.subr.mxu0 0.0
      %839 = vmatpush2.msra.mxu0 0.0
      %840 = vmatprep.subr.mxu0 0.0
      %841 = vmatpush2.msra.mxu0 0.0
      %842 = vmatprep.subr.mxu0 0.0
      %843 = vmatpush2.msra.mxu0 0.0
      %844 = vmatprep.subr.mxu0 0.0
      %845 = vmatpush2.msra.mxu0 0.0
      %846 = vmatprep.subr.mxu0 0.0
      %847 = vmatpush2.msra.mxu0 0.0
      %848 = vmatprep.subr.mxu0 0.0
      %849 = vmatpush2.msra.mxu0 0.0
      %850 = vmatprep.subr.mxu0 0.0
      %851 = vmatpush2.msra.mxu0 0.0
      %852 = vmatprep.subr.mxu0 0.0
      %853 = vmatpush2.msra.mxu0 0.0
      %854 = vmatprep.subr.mxu0 0.0
      %855 = vmatpush2.msra.mxu0 0.0
      %856 = vmatprep.subr.mxu0 0.0
      %857 = vmatpush2.msra.mxu0 0.0
      %858 = vmatprep.mubr.f32.mxu0 0.0
      %859 = vmatmul.mubr.f32.gmra.mxu0 %v581
      %v860 = vpop.f32.mrf.mxu0
      %v861 = vadd.f32 0.0, %v860
      %v862 = vpop.f32.mrf.mxu0
      %863 = vmatprep.mubr.f32.mxu0 0.0
      %864 = vmatmul.mubr.f32.gmra.mxu0 %v584
      %v865 = vpop.f32.mrf.mxu0
      %v866 = vadd.f32 0.0, %v865
      %v867 = vpop.f32.mrf.mxu0
      %868 = vmatprep.mubr.f32.mxu0 0.0
      %869 = vmatmul.mubr.f32.gmra.mxu0 %v587
      %v870 = vpop.f32.mrf.mxu0
      %v871 = vadd.f32 0.0, %v870
      %v872 = vpop.f32.mrf.mxu0
      %873 = vmatprep.mubr.f32.mxu0 0.0
      %874 = vmatmul.mubr.f32.gmra.mxu0 %v590
      %v875 = vpop.f32.mrf.mxu0
      %v876 = vadd.f32 0.0, %v875
      %v877 = vpop.f32.mrf.mxu0
      %878 = vmatprep.mubr.f32.mxu0 0.0
      %879 = vmatmul.mubr.f32.gmra.mxu0 %v593
      %v880 = vpop.f32.mrf.mxu0
      %v881 = vadd.f32 0.0, %v880
      %v882 = vpop.f32.mrf.mxu0
      %883 = vmatprep.mubr.f32.mxu0 0.0
      %884 = vmatmul.mubr.f32.gmra.mxu0 %v596
      %v885 = vpop.f32.mrf.mxu0
      %v886 = vadd.f32 0.0, %v885
      %v887 = vpop.f32.mrf.mxu0
      %888 = vmatprep.mubr.f32.mxu0 0.0
      %889 = vmatmul.mubr.f32.gmra.mxu0 %v599
      %v890 = vpop.f32.mrf.mxu0
      %v891 = vadd.f32 0.0, %v890
      %v892 = vpop.f32.mrf.mxu0
      %893 = vmatprep.mubr.f32.mxu0 0.0
      %894 = vmatmul.mubr.f32.gmra.mxu0 %v602
      %v895 = vpop.f32.mrf.mxu0
      %v896 = vadd.f32 0.0, %v895
      %v897 = vpop.f32.mrf.mxu0
      %898 = vmatprep.mubr.f32.mxu0 0.0
      %899 = vmatmul.mubr.f32.gmra.mxu0 %v605
      %v900 = vpop.f32.mrf.mxu0
      %v901 = vadd.f32 0.0, %v900
      %v902 = vpop.f32.mrf.mxu0
      %903 = vmatprep.mubr.f32.mxu0 0.0
      %904 = vmatmul.mubr.f32.gmra.mxu0 %v608
      %v905 = vpop.f32.mrf.mxu0
      %v906 = vadd.f32 0.0, %v905
      %v907 = vpop.f32.mrf.mxu0
      %908 = vmatprep.mubr.f32.mxu0 0.0
      %909 = vmatmul.mubr.f32.gmra.mxu0 %v611
      %v910 = vpop.f32.mrf.mxu0
      %v911 = vadd.f32 0.0, %v910
      %v912 = vpop.f32.mrf.mxu0
      %913 = vmatprep.mubr.f32.mxu0 0.0
      %914 = vmatmul.mubr.f32.gmra.mxu0 %v614
      %v915 = vpop.f32.mrf.mxu0
      %v916 = vadd.f32 0.0, %v915
      %v917 = vpop.f32.mrf.mxu0
      %918 = vmatprep.mubr.f32.mxu0 0.0
      %919 = vmatmul.mubr.f32.gmra.mxu0 %v617
      %v920 = vpop.f32.mrf.mxu0
      %v921 = vadd.f32 0.0, %v920
      %v922 = vpop.f32.mrf.mxu0
      %923 = vmatprep.mubr.f32.mxu0 0.0
      %924 = vmatmul.mubr.f32.gmra.mxu0 %v620
      %v925 = vpop.f32.mrf.mxu0
      %v926 = vadd.f32 0.0, %v925
      %v927 = vpop.f32.mrf.mxu0
      %928 = vmatprep.mubr.f32.mxu0 0.0
      %929 = vmatmul.mubr.f32.gmra.mxu0 %v623
      %v930 = vpop.f32.mrf.mxu0
      %v931 = vadd.f32 0.0, %v930
      %v932 = vpop.f32.mrf.mxu0
      %933 = vmatprep.mubr.f32.mxu0 0.0
      %934 = vmatmul.mubr.f32.gmra.mxu0 %v626
      %v935 = vpop.f32.mrf.mxu0
      %v936 = vadd.f32 0.0, %v935
      %v937 = vpop.f32.mrf.mxu0
      %938 = vdwg.mxu0
      %939 = vst.msk [vmem:[%s280] sm:$0xff] %vm773, %v861
      %940 = vst.msk [vmem:[%s280 + $0x8] sm:$0xff] %vm773, %v866
      %941 = vst.msk [vmem:[%s280 + $0x10] sm:$0xff] %vm773, %v871
      %942 = vst.msk [vmem:[%s280 + $0x18] sm:$0xff] %vm773, %v876
      %943 = vst.msk [vmem:[%s280 + $0x20] sm:$0xff] %vm773, %v881
      %944 = vst.msk [vmem:[%s280 + $0x28] sm:$0xff] %vm773, %v886
      %945 = vst.msk [vmem:[%s280 + $0x30] sm:$0xff] %vm773, %v891
      %946 = vst.msk [vmem:[%s280 + $0x38] sm:$0xff] %vm773, %v896
      %947 = vst.msk [vmem:[%s280 + $0x40] sm:$0xff] %vm773, %v901
      %948 = vst.msk [vmem:[%s280 + $0x48] sm:$0xff] %vm773, %v906
      %949 = vst.msk [vmem:[%s280 + $0x50] sm:$0xff] %vm773, %v911
      %950 = vst.msk [vmem:[%s280 + $0x58] sm:$0xff] %vm773, %v916
      %951 = vst.msk [vmem:[%s280 + $0x60] sm:$0xff] %vm773, %v921
      %952 = vst.msk [vmem:[%s280 + $0x68] sm:$0xff] %vm773, %v926
      %953 = vst.msk [vmem:[%s280 + $0x70] sm:$0xff] %vm773, %v931
      %954 = vst.msk [vmem:[%s280 + $0x78] sm:$0xff] %vm773, %v936
      %s955 = smul.u32 16, %s18
      %p956 = scmp.lt.s32.totalorder %s955, 31
      %s957 = scalar_select %p956, %s955, 31
      %s958 = smul.addr %s957, 4
      %s959 = scalar_lea.vmem %s4, %s958
      %s960 = smul.u32 16, %s18
      %p961 = scmp.lt.s32.totalorder %s960, 31
      %s962 = scalar_select %p961, %s960, 31
      %s963 = smul.addr %s962, 8
      %s964 = scalar_lea.vmem %s5, %s963
      %s965 = smul.u32 16, %s18
      %p966 = scmp.lt.s32.totalorder %s965, 31
      %s967 = scalar_select %p966, %s965, 31
      %s968 = smul.addr %s967, 8
      %s969 = scalar_lea.vmem %s6, %s968
      // Predicated region
      $region37: #{tpu_custom_call.1} parent=35 // pred_check
        %p970 = pneg %p125
      $region38: #{tpu_custom_call.1} parent=35 // pred_check_branch
        %972 = sbr.rel (%p970) target = $region40
      $region39: #{tpu_custom_call.1} parent=35 // pred_region
        %s973 = smul.u32 16, %s18
      $region40: #{tpu_custom_call.1} parent=35 // pred_fallthru
        _
      // Predicated region
      $region41: #{tpu_custom_call.1} parent=35 // pred_check
        %p974 = pneg %p151
      $region42: #{tpu_custom_call.1} parent=35 // pred_check_branch
        %976 = sbr.rel (%p974) target = $region44
      $region43: #{tpu_custom_call.1} parent=35 // pred_region
        %s977 = smul.u32 16, %s18
      $region44: #{tpu_custom_call.1} parent=35 // pred_fallthru
        _
      // Predicated region
      $region45: #{tpu_custom_call.1} parent=35 // pred_check
        %p978 = pneg %p177
      $region46: #{tpu_custom_call.1} parent=35 // pred_check_branch
        %980 = sbr.rel (%p978) target = $region48
      $region47: #{tpu_custom_call.1} parent=35 // pred_region
        %s981 = smul.u32 16, %s18
      $region48: #{tpu_custom_call.1} parent=35 // pred_fallthru
        _
    $region36: #{tpu_custom_call.1} parent=5 // pred_fallthru
      _
    %p982 = scmp.le.s32.totalorder 2, %s13
    // Predicated region
    $region49: #{tpu_custom_call.1} parent=5 // pred_check
      %p983 = pneg %p982
    $region50: #{tpu_custom_call.1} parent=5 // pred_check_branch
      %985 = sbr.rel (%p983) target = $region52
    $region51: #{tpu_custom_call.1} parent=5 // pred_region
      %s986 = ssub.s32 %s13, 2
      // Predicated region
      $region53: #{tpu_custom_call.1} parent=51 // pred_check
        %p987 = pneg %p131
      $region54: #{tpu_custom_call.1} parent=51 // pred_check_branch
        %989 = sbr.rel (%p987) target = $region56
      $region55: #{tpu_custom_call.1} parent=51 // pred_region
        %s990 = smul.u32 16, %s19
        %p991 = scmp.lt.s32.totalorder %s990, 31
        %s992 = scalar_select %p991, %s990, 31
        %s993 = smul.addr %s992, 4
        %s994 = scalar_lea.vmem %s4, %s993
      $region56: #{tpu_custom_call.1} parent=51 // pred_fallthru
        _
      // Predicated region
      $region57: #{tpu_custom_call.1} parent=51 // pred_check
        %p995 = pneg %p157
      $region58: #{tpu_custom_call.1} parent=51 // pred_check_branch
        %997 = sbr.rel (%p995) target = $region60
      $region59: #{tpu_custom_call.1} parent=51 // pred_region
        %s998 = smul.u32 16, %s19
        %p999 = scmp.lt.s32.totalorder %s998, 31
        %s1000 = scalar_select %p999, %s998, 31
        %s1001 = smul.addr %s1000, 8
        %s1002 = scalar_lea.vmem %s5, %s1001
      $region60: #{tpu_custom_call.1} parent=51 // pred_fallthru
        _
      // Predicated region
      $region61: #{tpu_custom_call.1} parent=51 // pred_check
        %p1003 = pneg %p183
      $region62: #{tpu_custom_call.1} parent=51 // pred_check_branch
        %1005 = sbr.rel (%p1003) target = $region64
      $region63: #{tpu_custom_call.1} parent=51 // pred_region
        %s1006 = smul.u32 16, %s19
        %p1007 = scmp.lt.s32.totalorder %s1006, 31
        %s1008 = scalar_select %p1007, %s1006, 31
        %s1009 = smul.addr %s1008, 8
        %s1010 = scalar_lea.vmem %s6, %s1009
      $region64: #{tpu_custom_call.1} parent=51 // pred_fallthru
        _
    $region52: #{tpu_custom_call.1} parent=5 // pred_fallthru
      _
  $region6: #{tpu_custom_call.1} parent=0 // loop_footer
    %s17 = sadd.s32 1, %s13
  $region7: #{tpu_custom_call.1} parent=0 // loop_footer_branch
    %12 = sbr.rel target = $region3
  $region8: #{tpu_custom_call.1} parent=0 // loop_exit
    _

</llo_original>
